<compile_context>
chip_gen: v6e
topology: v6e:2x2x1
jax: 0.10.0
libtpu: 0.0.40
codegen_flags: <defaults>
</compile_context>

<pallas_src>
import functools

import jax
import jax.numpy as jnp
from jax.experimental import pallas as pl
from jax.experimental.pallas import tpu as pltpu


# ----------------------------------------------------------------------------
# Helpers
# ----------------------------------------------------------------------------
def _round_up(v: int, m: int) -> int:
    return ((v + m - 1) // m) * m


def _interp_matrix(out_size: int, in_size: int) -> jnp.ndarray:
    """Dense 1-D linear interpolation matrix, align_corners=True semantics."""
    out_idx = jnp.arange(out_size, dtype=jnp.float32)
    scale = (in_size - 1) / (out_size - 1) if out_size > 1 else 0.0
    src = out_idx * scale
    i0 = jnp.clip(jnp.floor(src).astype(jnp.int32), 0, in_size - 1)
    i1 = jnp.clip(i0 + 1, 0, in_size - 1)
    w1 = src - i0.astype(jnp.float32)
    w0 = 1.0 - w1
    eye = jnp.eye(in_size, dtype=jnp.float32)
    return w0[:, None] * eye[i0] + w1[:, None] * eye[i1]


def _vmem_capacity_bytes() -> int:
    """Per-core VMEM capacity (128 MiB v5e/v6e, 64 MiB v7x); conservative fallback."""
    try:
        info = pltpu.get_tpu_info()
        cap = int(getattr(info, "vmem_capacity_bytes", 0) or 0)
        if cap > 0:
            return cap
    except Exception:
        pass
    return 64 << 20          # safe fallback (works on every generation)


def _vmem_limit_bytes() -> int:
    """Generation-aware scoped-VMEM limit: ~75% of physical per-core VMEM, capped."""
    cap = _vmem_capacity_bytes()
    return max(32 << 20, min(96 << 20, (cap * 3) // 4))


@functools.lru_cache(maxsize=None)
def _single_buffered_weights_ok() -> bool:
    """Feature-detect pipeline_mode=pl.Buffered(1) for never-changing (resident) blocks."""
    if not hasattr(pl, "Buffered"):
        return False
    try:
        def k(x_ref, w_ref, o_ref):
            o_ref[...] = x_ref[...] + w_ref[...]

        f = pl.pallas_call(
            k,
            out_shape=jax.ShapeDtypeStruct((8, 128), jnp.float32),
            grid=(1,),
            in_specs=[
                pl.BlockSpec((8, 128), lambda i: (0, 0)),
                pl.BlockSpec((8, 128), lambda i: (0, 0), pipeline_mode=pl.Buffered(1)),
            ],
            out_specs=pl.BlockSpec((8, 128), lambda i: (0, 0)),
        )
        z = jnp.zeros((8, 128), jnp.float32)
        jax.block_until_ready(f(z, z))
        return True
    except Exception:
        return False


def _resident_spec(block_shape, index_map):
    """BlockSpec for a weight tile whose block index never changes (resident in VMEM)."""
    if _single_buffered_weights_ok():
        return pl.BlockSpec(block_shape, index_map, pipeline_mode=pl.Buffered(1))
    return pl.BlockSpec(block_shape, index_map)


def _weight_buffer_factor() -> int:
    return 1 if _single_buffered_weights_ok() else 2


def _pick_rows_per_block(nc: int, bytes_per_row: int, resident_bytes: int,
                         vmem_budget: int, target: int = 1024) -> int:
    """Pick TC (N*C slabs per grid step): multiple of 8, sized against the VMEM budget."""
    avail = max(vmem_budget - resident_bytes, bytes_per_row * 8)
    tc = int(min(target, max(8, avail // bytes_per_row)))
    tc -= tc % 8
    tc = max(tc, 8)
    # Keep at least 2 grid steps so both TensorCores of a dual-TC chip (v7x) get work
    # via the "parallel" grid axis; costs ~0.35us extra per step on 1-TC chips.
    if nc >= 16:
        tc = min(tc, max(8, (nc // 2) // 8 * 8))
    if nc <= tc:
        return nc            # single block covering all rows (block == full dim is legal)
    return tc


def _pad_rows(arr, nc: int, tc: int):
    nc_pad = _round_up(nc, tc)
    if nc_pad != nc:
        pad = [(0, nc_pad - nc)] + [(0, 0)] * (arr.ndim - 1)
        arr = jnp.pad(arr, pad)
    return arr, nc_pad


# ----------------------------------------------------------------------------
# Fused (Kronecker) path: one big lane-dense matmul per block.
# ----------------------------------------------------------------------------
def _fused_kernel(x_ref, k_ref, o_ref, *, compute_dtype):
    # x_ref: (TC, K_pad)   k_ref: (K_pad, N_pad)   o_ref: (TC, N_pad)
    x = x_ref[...].astype(compute_dtype)
    o_ref[...] = jnp.dot(x, k_ref[...],
                         preferred_element_type=jnp.float32).astype(o_ref.dtype)


def _upsample_fused(x_flat, wh, ww, compute_dtype):
    NC, H_in, W_in = x_flat.shape
    H_out, W_out = wh.shape[0], ww.shape[0]
    K, Nout = H_in * W_in, H_out * W_out
    K_pad, N_pad = _round_up(K, 128), _round_up(Nout, 128)

    # kmat[(h,w), (o,p)] = wh[o,h] * ww[p,w]; zero-pad to lane-dense (K_pad, N_pad).
    kmat = jnp.einsum("oh,pw->hwop", wh, ww).reshape(K, Nout)
    if (K_pad, N_pad) != (K, Nout):
        kmat = jnp.pad(kmat, ((0, K_pad - K), (0, N_pad - Nout)))
    kmat = kmat.astype(compute_dtype)

    x2d = x_flat.reshape(NC, K)
    if K_pad != K:
        x2d = jnp.pad(x2d, ((0, 0), (0, K_pad - K)))

    in_item = jnp.dtype(x2d.dtype).itemsize
    out_item = jnp.dtype(x_flat.dtype).itemsize
    vmem_limit = _vmem_limit_bytes()
    resident = _weight_buffer_factor() * kmat.size * jnp.dtype(compute_dtype).itemsize
    # double-buffered in + out blocks, plus the f32 matmul result held in vregs/VMEM
    bytes_per_row = 2 * in_item * K_pad + 2 * out_item * N_pad + 4 * N_pad
    tc = _pick_rows_per_block(NC, bytes_per_row, resident, vmem_limit - (4 << 20))
    x2d, nc_pad = _pad_rows(x2d, NC, tc)
    grid = (nc_pad // tc,)

    cost = pl.CostEstimate(
        flops=int(2 * nc_pad * K_pad * N_pad),
        transcendentals=0,
        bytes_accessed=int(nc_pad * K_pad * in_item + kmat.nbytes
                           + nc_pad * N_pad * out_item),
    )

    out2d = pl.pallas_call(
        functools.partial(_fused_kernel, compute_dtype=compute_dtype),
        out_shape=jax.ShapeDtypeStruct((nc_pad, N_pad), x_flat.dtype),
        grid_spec=pltpu.PrefetchScalarGridSpec(
            num_scalar_prefetch=0,
            grid=grid,
            in_specs=[
                pl.BlockSpec((tc, K_pad), lambda i: (i, 0)),
                _resident_spec((K_pad, N_pad), lambda i: (0, 0)),   # resident weight tile
            ],
            out_specs=pl.BlockSpec((tc, N_pad), lambda i: (i, 0)),
        ),
        compiler_params=pltpu.CompilerParams(
            dimension_semantics=("parallel",),
            vmem_limit_bytes=int(vmem_limit),
        ),
        cost_estimate=cost,
    )(x2d, kmat)

    return out2d[:NC, :Nout].reshape(NC, H_out, W_out)


# ----------------------------------------------------------------------------
# Separable path: both contractions folded into the matmul M dimension.
# ----------------------------------------------------------------------------
def _separable_kernel(x_ref, whT_ref, wwT_ref, o_ref, *, cols_first, compute_dtype):
    tc, h_in, w_in = x_ref.shape
    _, h_out, w_out = o_ref.shape
    x = x_ref[...].astype(compute_dtype)
    whT = whT_ref[...]        # (h_in, h_out)
    wwT = wwT_ref[...]        # (w_in, w_out)
    if cols_first:
        # W pass folded into M: (TC*H_in, W_in) @ (W_in, W_out)
        t = jnp.dot(x.reshape(tc * h_in, w_in), wwT,
                    preferred_element_type=jnp.float32)
        # H pass: XLU swap so H_in becomes the contraction, then ONE big 2-D matmul
        # (TC*W_out, H_in) @ (H_in, H_out) instead of TC tiny batched matmuls.
        t = jnp.swapaxes(t.reshape(tc, h_in, w_out), 1, 2)
        t = t.reshape(tc * w_out, h_in).astype(compute_dtype)
        out = jnp.dot(t, whT, preferred_element_type=jnp.float32)
        out = jnp.swapaxes(out.reshape(tc, w_out, h_out), 1, 2)     # (TC, H_out, W_out)
    else:
        # H pass first: (TC*W_in, H_in) @ (H_in, H_out)
        t = jnp.swapaxes(x, 1, 2).reshape(tc * w_in, h_in)
        t = jnp.dot(t, whT, preferred_element_type=jnp.float32)
        t = jnp.swapaxes(t.reshape(tc, w_in, h_out), 1, 2)          # (TC, H_out, W_in)
        # W pass folded into M: (TC*H_out, W_in) @ (W_in, W_out)
        t = t.reshape(tc * h_out, w_in).astype(compute_dtype)
        out = jnp.dot(t, wwT, preferred_element_type=jnp.float32)
        out = out.reshape(tc, h_out, w_out)
    o_ref[...] = out.astype(o_ref.dtype)


def _upsample_separable(x_flat, wh, ww, compute_dtype):
    NC, H_in, W_in = x_flat.shape
    H_out, W_out = wh.shape[0], ww.shape[0]
    whT = wh.T.astype(compute_dtype)          # (H_in, H_out)
    wwT = ww.T.astype(compute_dtype)          # (W_in, W_out)

    # Trace-time matmul order selection by FLOP count (MACs per NC slab).
    cost_cols_first = H_in * W_in * W_out + W_out * H_in * H_out
    cost_rows_first = W_in * H_in * H_out + H_out * W_in * W_out
    cols_first = cost_cols_first <= cost_rows_first

    in_item = jnp.dtype(x_flat.dtype).itemsize
    out_item = in_item
    mid_elems = (H_in * W_out) if cols_first else (H_out * W_in)
    vmem_limit = _vmem_limit_bytes()
    resident = _weight_buffer_factor() * (whT.nbytes + wwT.nbytes)
    bytes_per_row = (2 * in_item * H_in * W_in + 2 * out_item * H_out * W_out
                     + 2 * 4 * mid_elems + 4 * H_out * W_out)       # f32 intermediates
    tc = _pick_rows_per_block(NC, bytes_per_row, resident, vmem_limit - (4 << 20))
    x_in, nc_pad = _pad_rows(x_flat, NC, tc)
    grid = (nc_pad // tc,)

    cost = pl.CostEstimate(
        flops=int(2 * nc_pad * (cost_cols_first if cols_first else cost_rows_first)),
        transcendentals=0,
        bytes_accessed=int(nc_pad * (H_in * W_in * in_item + H_out * W_out * out_item)
                           + whT.nbytes + wwT.nbytes),
    )

    out = pl.pallas_call(
        functools.partial(_separable_kernel, cols_first=cols_first,
                          compute_dtype=compute_dtype),
        out_shape=jax.ShapeDtypeStruct((nc_pad, H_out, W_out), x_flat.dtype),
        grid_spec=pltpu.PrefetchScalarGridSpec(
            num_scalar_prefetch=0,
            grid=grid,
            in_specs=[
                pl.BlockSpec((tc, H_in, W_in), lambda i: (i, 0, 0)),
                _resident_spec((H_in, H_out), lambda i: (0, 0)),    # resident weights
                _resident_spec((W_in, W_out), lambda i: (0, 0)),
            ],
            out_specs=pl.BlockSpec((tc, H_out, W_out), lambda i: (i, 0, 0)),
        ),
        compiler_params=pltpu.CompilerParams(
            dimension_semantics=("parallel",),
            vmem_limit_bytes=int(vmem_limit),
        ),
        cost_estimate=cost,
    )(x_in, whT, wwT)

    if nc_pad != NC:
        out = out[:NC]
    return out


# ----------------------------------------------------------------------------
# Public wrapper (forward pass of the PyTorch Upsample module).
# ----------------------------------------------------------------------------
def upsample_bilinear_align_corners(x: jnp.ndarray, size, *, precision="float32",
                                    force_impl=None) -> jnp.ndarray:
    """x: (N, C, H_in, W_in) -> (N, C, H_out, W_out), bilinear, align_corners=True.

    precision: "float32" (PyTorch parity, default) or "bfloat16" (bf16 MXU feeds with
    f32 accumulation; ~1e-3 relative error vs fp32).
    """
    N, C, H_in, W_in = x.shape
    H_out, W_out = int(size[0]), int(size[1])
    NC = N * C

    compute_dtype = jnp.bfloat16 if precision in ("bfloat16", "bf16") else jnp.float32

    wh = _interp_matrix(H_out, H_in)   # (H_out, H_in)
    ww = _interp_matrix(W_out, W_in)   # (W_out, W_in)
    x_flat = x.reshape(NC, H_in, W_in)

    # Path selection: fused only if its (padded) weight fits a generation-aware VMEM cap
    # AND either the separable path would be lane-masked (W not a multiple of 128) or
    # the fused MAC blow-up stays modest.
    vmem_limit = _vmem_limit_bytes()
    K, Nout = H_in * W_in, H_out * W_out
    fused_weight_bytes = (_weight_buffer_factor() * _round_up(K, 128) * _round_up(Nout, 128)
                          * jnp.dtype(compute_dtype).itemsize)
    fused_cap = max(2 << 20, vmem_limit // 8)
    sep_macs = min(H_in * W_in * W_out + W_out * H_in * H_out,
                   W_in * H_in * H_out + H_out * W_in * W_out)
    fused_macs = K * Nout
    sep_lane_dense = (W_in % 128 == 0) and (W_out % 128 == 0)
    use_fused = (fused_weight_bytes <= fused_cap
                 and ((not sep_lane_dense) or fused_macs <= 4 * sep_macs))
    if force_impl == "fused":
        use_fused = True
    elif force_impl == "separable":
        use_fused = False

    if use_fused:
        out_flat = _upsample_fused(x_flat, wh, ww, compute_dtype)
    else:
        out_flat = _upsample_separable(x_flat, wh, ww, compute_dtype)
    return out_flat.reshape(N, C, H_out, W_out)


if __name__ == "__main__":
    key = jax.random.PRNGKey(0)
    N, C, H_in, W_in = 2, 4, 16, 16
    size = (32, 24)   # target (H_out, W_out), as in Upsample(size=(32, 24))

    x = jax.random.normal(key, (N, C, H_in, W_in), dtype=jnp.float32)

    wh = _interp_matrix(size[0], H_in)
    wwT = _interp_matrix(size[1], W_in).T
    ref = jnp.einsum("oh,nchw,wq->ncoq", wh, x, wwT)

    # Auto-selected path (fused Kronecker matmul for these small spatial dims).
    out = jax.block_until_ready(upsample_bilinear_align_corners(x, size))
    assert out.shape == (N, C, size[0], size[1])
    assert jnp.allclose(out, ref, atol=1e-5, rtol=1e-5)

    # Separable fallback (cols-first order at this size).
    out_sep = jax.block_until_ready(
        upsample_bilinear_align_corners(x, size, force_impl="separable"))
    assert jnp.allclose(out_sep, ref, atol=1e-5, rtol=1e-5)

    # And the rows-first order of the separable kernel.
    size2 = (24, 32)
    out_sep2 = jax.block_until_ready(
        upsample_bilinear_align_corners(x, size2, force_impl="separable"))
    wh2 = _interp_matrix(size2[0], H_in)
    wwT2 = _interp_matrix(size2[1], W_in).T
    ref2 = jnp.einsum("oh,nchw,wq->ncoq", wh2, x, wwT2)
    assert jnp.allclose(out_sep2, ref2, atol=1e-5, rtol=1e-5)

    # bf16 fast path (MXU-native feeds, f32 accumulation); looser tolerance vs fp32 ref.
    out_bf16 = jax.block_until_ready(
        upsample_bilinear_align_corners(x, size, precision="bfloat16"))
    assert jnp.allclose(out_bf16, ref, atol=1e-1, rtol=1e-1)

    print("KERNEL_OK")
</pallas_src>

<mosaic_0001>
module attributes {stable_mosaic.version = 11 : i64} {
  func.func @k(%arg0: i32, %arg1: memref<8x128xf32, #tpu.memory_space<vmem>>, %arg2: memref<8x128xf32, #tpu.memory_space<vmem>>, %arg3: memref<8x128xf32, #tpu.memory_space<vmem>>) attributes {dimension_semantics = [#tpu.dimension_semantics<arbitrary>], iteration_bounds = array<i64: 1>, scalar_prefetch = 0 : i64, scratch_operands = 0 : i64, tpu.core_type = #tpu.core_type<tc>, window_params = [{pipeline_mode = #tpu.pipeline_mode<synchronous>, transform_indices = @transform_0, window_bounds = array<i64: 8, 128>}, {pipeline_mode = #tpu.pipeline_mode<synchronous>, transform_indices = @transform_1, window_bounds = array<i64: 8, 128>}, {pipeline_mode = #tpu.pipeline_mode<synchronous>, transform_indices = @transform_2, window_bounds = array<i64: 8, 128>}]} {
    %c0 = arith.constant 0 : index
    %c0_0 = arith.constant 0 : index
    %0 = vector.load %arg1[%c0, %c0_0] : memref<8x128xf32, #tpu.memory_space<vmem>>, vector<8x128xf32>
    %c0_1 = arith.constant 0 : index
    %c0_2 = arith.constant 0 : index
    %1 = vector.load %arg2[%c0_1, %c0_2] : memref<8x128xf32, #tpu.memory_space<vmem>>, vector<8x128xf32>
    %2 = arith.addf %0, %1 : vector<8x128xf32>
    %c0_3 = arith.constant 0 : index
    %c0_4 = arith.constant 0 : index
    %3 = vector.load %arg3[%c0_3, %c0_4] : memref<8x128xf32, #tpu.memory_space<vmem>>, vector<8x128xf32>
    tpu.vector_store %arg3[%c0_3, %c0_4], %2 {strides = array<i32>} : memref<8x128xf32, #tpu.memory_space<vmem>>, vector<8x128xf32>,
    return
  }
  func.func @transform_0(%arg0: i32) -> (i32, i32) {
    %c0_i32 = arith.constant 0 : i32
    %c0_i32_0 = arith.constant 0 : i32
    %c0_i32_1 = arith.constant 0 : i32
    return %c0_i32, %c0_i32_0 : i32, i32
  }
  func.func @transform_1(%arg0: i32) -> (i32, i32) {
    %c0_i32 = arith.constant 0 : i32
    %c0_i32_0 = arith.constant 0 : i32
    %c0_i32_1 = arith.constant 0 : i32
    return %c0_i32, %c0_i32_0 : i32, i32
  }
  func.func @transform_2(%arg0: i32) -> (i32, i32) {
    %c0_i32 = arith.constant 0 : i32
    %c0_i32_0 = arith.constant 0 : i32
    %c0_i32_1 = arith.constant 0 : i32
    return %c0_i32, %c0_i32_0 : i32, i32
  }
}

module attributes {stable_mosaic.version = 11 : i64} {
  func.func @_fused_kernel(%arg0: i32, %arg1: memref<8x256xf32, #tpu.memory_space<vmem>>, %arg2: memref<256x768xf32, #tpu.memory_space<vmem>>, %arg3: memref<8x768xf32, #tpu.memory_space<vmem>>) attributes {dimension_semantics = [#tpu.dimension_semantics<parallel>], iteration_bounds = array<i64: 1>, scalar_prefetch = 0 : i64, scratch_operands = 0 : i64, tpu.core_type = #tpu.core_type<tc>, window_params = [{transform_indices = @transform_0, window_bounds = array<i64: 8, 256>}, {pipeline_mode = #tpu.pipeline_mode<synchronous>, transform_indices = @transform_1, window_bounds = array<i64: 256, 768>}, {transform_indices = @transform_2, window_bounds = array<i64: 8, 768>}]} {
    %c0 = arith.constant 0 : index
    %c0_0 = arith.constant 0 : index
    %0 = vector.load %arg1[%c0, %c0_0] : memref<8x256xf32, #tpu.memory_space<vmem>>, vector<8x256xf32>
    %c0_1 = arith.constant 0 : index
    %c0_2 = arith.constant 0 : index
    %1 = vector.load %arg2[%c0_1, %c0_2] : memref<256x768xf32, #tpu.memory_space<vmem>>, vector<256x768xf32>
    %cst = arith.constant dense<0.000000e+00> : vector<8x768xf32>
    %2 = tpu.matmul %0, %1, %cst {dimension_numbers = #tpu.dot_dimension_numbers<[1], [0], [0], [1], [0, 0, 1, 1], [], []>} : vector<8x256xf32>, vector<256x768xf32>, vector<8x768xf32> -> vector<8x768xf32>
    %c0_3 = arith.constant 0 : index
    %c0_4 = arith.constant 0 : index
    %3 = vector.load %arg3[%c0_3, %c0_4] : memref<8x768xf32, #tpu.memory_space<vmem>>, vector<8x768xf32>
    tpu.vector_store %arg3[%c0_3, %c0_4], %2 {strides = array<i32>} : memref<8x768xf32, #tpu.memory_space<vmem>>, vector<8x768xf32>,
    return
  }
  func.func @transform_0(%arg0: i32) -> (i32, i32) {
    %c0_i32 = arith.constant 0 : i32
    %c0_i32_0 = arith.constant 0 : i32
    return %arg0, %c0_i32 : i32, i32
  }
  func.func @transform_1(%arg0: i32) -> (i32, i32) {
    %c0_i32 = arith.constant 0 : i32
    %c0_i32_0 = arith.constant 0 : i32
    %c0_i32_1 = arith.constant 0 : i32
    return %c0_i32, %c0_i32_0 : i32, i32
  }
  func.func @transform_2(%arg0: i32) -> (i32, i32) {
    %c0_i32 = arith.constant 0 : i32
    %c0_i32_0 = arith.constant 0 : i32
    return %arg0, %c0_i32 : i32, i32
  }
}

</mosaic_0001>

<llo_original>
// kernel: tpu_custom_call.1
$region0: #{tpu_custom_call.1}
  #allocation0 [shape = 'u32[]', space=smem, size = 0x4, offset = 0x4, fixed_abs, tag = 'smem constant byte address 0x4 - core index']
  #allocation1 [shape = 'u32[144,128]{1,0:T(1,128)}', space=vmem, size = 0x12000, scoped, tag = 'internal scratch']
  %s0 = inlined_call_operand.hbm [shape: f32[8,128], index: 0, kind: input, shape index: {}]
  %s1 = inlined_call_operand.hbm [shape: f32[8,128], index: 1, kind: input, shape index: {}]
  %s2 = inlined_call_operand.hbm [shape: f32[8,128], index: 2, kind: output, shape index: {}]
  %s3 = sld [smem:[#allocation0]]
  $region26: #{tpu_custom_call.1} parent=0
    _
  %s5 = ssub.s32 1, %s3
  %s6 = scalar_select 0, %s5, %s3
  $region1: #{tpu_custom_call.1} parent=0
    #allocation2 [shape = 'u8[4096]{0}', space=vmem, size = 0x1000, scoped, tag = 'input window, operand 0, single buffered']
    #allocation3 [shape = 's32[1]{0}', space=sflag, size = 0x4, scoped, tag = 'scoped memory for tpu_custom_call.1']
    #allocation4 [shape = 's32[1]{0}', space=sflag, size = 0x4, scoped, tag = 'scoped memory for tpu_custom_call.1']
    #allocation5 [shape = 'u8[4096]{0}', space=vmem, size = 0x1000, scoped, tag = 'input window, operand 1, single buffered']
    #allocation6 [shape = 's32[1]{0}', space=sflag, size = 0x4, scoped, tag = 'scoped memory for tpu_custom_call.1']
    #allocation7 [shape = 'u8[4096]{0}', space=vmem, size = 0x1000, scoped, tag = 'output window, operand 0, single buffered']
    %7 = vsyncpa [#allocation3], 0
    %8 = vsyncpa [#allocation6], 0
    %9 = vsyncpa [#allocation4], 0
    // Predicated region
    $region2: #{tpu_custom_call.1} parent=1 // pred_check
      _
    $region3: #{tpu_custom_call.1} parent=1 // pred_check_branch
      %11 = sbr.rel (0) target = $region5
    $region4: #{tpu_custom_call.1} parent=1 // pred_region
      %s13 = ssub.s32 128, 128
      %14 = vsyncadd [#allocation3], %s13
      %s16 = sshll.u32 [#allocation2], 4
      %s17 = int_to_ptr.vmem [resolvable:$true] %s16
      %19 = dma.hbm_to_vmem [thread:$0]  %s0, 128, %s17, [#allocation3]
    $region5: #{tpu_custom_call.1} parent=1 // pred_fallthru
      _
    // Predicated region
    $region6: #{tpu_custom_call.1} parent=1 // pred_check
      _
    $region7: #{tpu_custom_call.1} parent=1 // pred_check_branch
      %21 = sbr.rel (0) target = $region9
    $region8: #{tpu_custom_call.1} parent=1 // pred_region
      %s23 = ssub.s32 128, 128
      %24 = vsyncadd [#allocation6], %s23
      %s26 = sshll.u32 [#allocation5], 4
      %s27 = int_to_ptr.vmem [resolvable:$true] %s26
      %29 = dma.hbm_to_vmem [thread:$0]  %s1, 128, %s27, [#allocation6]
    $region9: #{tpu_custom_call.1} parent=1 // pred_fallthru
      _
    // Predicated region
    $region10: #{tpu_custom_call.1} parent=1 // pred_check
      _
    $region11: #{tpu_custom_call.1} parent=1 // pred_check_branch
      %31 = sbr.rel (0) target = $region13
    $region12: #{tpu_custom_call.1} parent=1 // pred_region
      %32 = dma.done [#allocation3], 128
    $region13: #{tpu_custom_call.1} parent=1 // pred_fallthru
      _
    // Predicated region
    $region14: #{tpu_custom_call.1} parent=1 // pred_check
      _
    $region15: #{tpu_custom_call.1} parent=1 // pred_check_branch
      %34 = sbr.rel (0) target = $region17
    $region16: #{tpu_custom_call.1} parent=1 // pred_region
      %35 = dma.done [#allocation6], 128
    $region17: #{tpu_custom_call.1} parent=1 // pred_fallthru
      _
    %v36 = vld [vmem:[#allocation2] sm:$0xff]
    %v37 = vld [vmem:[#allocation5] sm:$0xff]
    %v38 = vadd.f32 %v36, %v37
    %39 = vst [vmem:[#allocation7] sm:$0xff] %v38
    // Predicated region
    $region18: #{tpu_custom_call.1} parent=1 // pred_check
      _
    $region19: #{tpu_custom_call.1} parent=1 // pred_check_branch
      %41 = sbr.rel (0) target = $region21
    $region20: #{tpu_custom_call.1} parent=1 // pred_region
      %s43 = ssub.s32 128, 128
      %44 = vsyncadd [#allocation4], %s43
      %s46 = sshll.u32 [#allocation7], 4
      %s47 = int_to_ptr.vmem [resolvable:$true] %s46
      %49 = dma.vmem_to_hbm [thread:$0]  %s47, 128, %s2, [#allocation4]
    $region21: #{tpu_custom_call.1} parent=1 // pred_fallthru
      _
    // Predicated region
    $region22: #{tpu_custom_call.1} parent=1 // pred_check
      _
    $region23: #{tpu_custom_call.1} parent=1 // pred_check_branch
      %51 = sbr.rel (0) target = $region25
    $region24: #{tpu_custom_call.1} parent=1 // pred_region
      %52 = dma.done [#allocation4], 128
    $region25: #{tpu_custom_call.1} parent=1 // pred_fallthru
      _
    %53 = vsyncpa [#allocation3], 1
    %54 = vsyncpa [#allocation6], 1
    %55 = vsyncpa [#allocation4], 1

// kernel: tpu_custom_call.1
$region0: #{tpu_custom_call.1}
  #allocation0 [shape = 'u32[]', space=smem, size = 0x4, offset = 0x4, fixed_abs, tag = 'smem constant byte address 0x4 - core index']
  #allocation1 [shape = 'u32[144,128]{1,0:T(1,128)}', space=vmem, size = 0x12000, scoped, tag = 'internal scratch']
  %s0 = inlined_call_operand.hbm [shape: f32[8,256], index: 0, kind: input, shape index: {}]
  %s1 = inlined_call_operand.hbm [shape: f32[256,768], index: 1, kind: input, shape index: {}]
  %s2 = inlined_call_operand.hbm [shape: f32[8,768], index: 2, kind: output, shape index: {}]
  %s3 = sld [smem:[#allocation0]]
  $region26: #{tpu_custom_call.1} parent=0
    _
  %s5 = ssub.s32 1, %s3
  %s6 = scalar_select 0, %s5, %s3
  $region1: #{tpu_custom_call.1} parent=0
    #allocation2 [shape = 'u8[8192]{0}', space=vmem, size = 0x2000, scoped, tag = 'input window, operand 0, single buffered']
    #allocation3 [shape = 's32[1]{0}', space=sflag, size = 0x4, scoped, tag = 'scoped memory for tpu_custom_call.1']
    #allocation4 [shape = 's32[1]{0}', space=sflag, size = 0x4, scoped, tag = 'scoped memory for tpu_custom_call.1']
    #allocation5 [shape = 'u8[786432]{0}', space=vmem, size = 0xc0000, scoped, tag = 'input window, operand 1, single buffered']
    #allocation6 [shape = 's32[1]{0}', space=sflag, size = 0x4, scoped, tag = 'scoped memory for tpu_custom_call.1']
    #allocation7 [shape = 'u8[24576]{0}', space=vmem, size = 0x6000, scoped, tag = 'output window, operand 0, single buffered']
    %7 = vsyncpa [#allocation3], 0
    %8 = vsyncpa [#allocation6], 0
    %9 = vsyncpa [#allocation4], 0
    // Predicated region
    $region2: #{tpu_custom_call.1} parent=1 // pred_check
      _
    $region3: #{tpu_custom_call.1} parent=1 // pred_check_branch
      %11 = sbr.rel (0) target = $region5
    $region4: #{tpu_custom_call.1} parent=1 // pred_region
      %s13 = ssub.s32 256, 256
      %14 = vsyncadd [#allocation3], %s13
      %s16 = sshll.u32 [#allocation2], 4
      %s17 = int_to_ptr.vmem [resolvable:$true] %s16
      %19 = dma.hbm_to_vmem [thread:$0]  %s0, 256, %s17, [#allocation3]
    $region5: #{tpu_custom_call.1} parent=1 // pred_fallthru
      _
    // Predicated region
    $region6: #{tpu_custom_call.1} parent=1 // pred_check
      _
    $region7: #{tpu_custom_call.1} parent=1 // pred_check_branch
      %21 = sbr.rel (0) target = $region9
    $region8: #{tpu_custom_call.1} parent=1 // pred_region
      %s23 = ssub.s32 24576, 24576
      %24 = vsyncadd [#allocation6], %s23
      %s25 = sshll.u32 [#allocation5], 4
      %s26 = int_to_ptr.vmem [resolvable:$true] %s25
      %31 = dma.hbm_to_vmem [thread:$0]  %s1, 24576, %s26, [#allocation6], 768, 768, 48
    $region9: #{tpu_custom_call.1} parent=1 // pred_fallthru
      _
    // Predicated region
    $region10: #{tpu_custom_call.1} parent=1 // pred_check
      _
    $region11: #{tpu_custom_call.1} parent=1 // pred_check_branch
      %33 = sbr.rel (0) target = $region13
    $region12: #{tpu_custom_call.1} parent=1 // pred_region
      %34 = dma.done [#allocation3], 256
    $region13: #{tpu_custom_call.1} parent=1 // pred_fallthru
      _
    // Predicated region
    $region14: #{tpu_custom_call.1} parent=1 // pred_check
      _
    $region15: #{tpu_custom_call.1} parent=1 // pred_check_branch
      %36 = sbr.rel (0) target = $region17
    $region16: #{tpu_custom_call.1} parent=1 // pred_region
      %37 = dma.done [#allocation6], 24576
    $region17: #{tpu_custom_call.1} parent=1 // pred_fallthru
      _
    %v38 = vld [vmem:[#allocation2] sm:$0xff]
    %v39 = vld [vmem:[#allocation2 + $0x8] sm:$0xff]
    %v40 = vld [vmem:[#allocation5] sm:$0xff]
    %v41 = vld [vmem:[#allocation5 + $0x8] sm:$0xff]
    %v42 = vld [vmem:[#allocation5 + $0x10] sm:$0xff]
    %v43 = vld [vmem:[#allocation5 + $0x18] sm:$0xff]
    %v44 = vld [vmem:[#allocation5 + $0x20] sm:$0xff]
    %v45 = vld [vmem:[#allocation5 + $0x28] sm:$0xff]
    %v46 = vld [vmem:[#allocation5 + $0x30] sm:$0xff]
    %v47 = vld [vmem:[#allocation5 + $0x38] sm:$0xff]
    %v48 = vld [vmem:[#allocation5 + $0x40] sm:$0xff]
    %v49 = vld [vmem:[#allocation5 + $0x48] sm:$0xff]
    %v50 = vld [vmem:[#allocation5 + $0x50] sm:$0xff]
    %v51 = vld [vmem:[#allocation5 + $0x58] sm:$0xff]
    %v52 = vld [vmem:[#allocation5 + $0x60] sm:$0xff]
    %v53 = vld [vmem:[#allocation5 + $0x68] sm:$0xff]
    %v54 = vld [vmem:[#allocation5 + $0x70] sm:$0xff]
    %v55 = vld [vmem:[#allocation5 + $0x78] sm:$0xff]
    %v56 = vld [vmem:[#allocation5 + $0x80] sm:$0xff]
    %v57 = vld [vmem:[#allocation5 + $0x88] sm:$0xff]
    %v58 = vld [vmem:[#allocation5 + $0x90] sm:$0xff]
    %v59 = vld [vmem:[#allocation5 + $0x98] sm:$0xff]
    %v60 = vld [vmem:[#allocation5 + $0xa0] sm:$0xff]
    %v61 = vld [vmem:[#allocation5 + $0xa8] sm:$0xff]
    %v62 = vld [vmem:[#allocation5 + $0xb0] sm:$0xff]
    %v63 = vld [vmem:[#allocation5 + $0xb8] sm:$0xff]
    %v64 = vld [vmem:[#allocation5 + $0xc0] sm:$0xff]
    %v65 = vld [vmem:[#allocation5 + $0xc8] sm:$0xff]
    %v66 = vld [vmem:[#allocation5 + $0xd0] sm:$0xff]
    %v67 = vld [vmem:[#allocation5 + $0xd8] sm:$0xff]
    %v68 = vld [vmem:[#allocation5 + $0xe0] sm:$0xff]
    %v69 = vld [vmem:[#allocation5 + $0xe8] sm:$0xff]
    %v70 = vld [vmem:[#allocation5 + $0xf0] sm:$0xff]
    %v71 = vld [vmem:[#allocation5 + $0xf8] sm:$0xff]
    %v72 = vld [vmem:[#allocation5 + $0x100] sm:$0xff]
    %v73 = vld [vmem:[#allocation5 + $0x108] sm:$0xff]
    %v74 = vld [vmem:[#allocation5 + $0x110] sm:$0xff]
    %v75 = vld [vmem:[#allocation5 + $0x118] sm:$0xff]
    %v76 = vld [vmem:[#allocation5 + $0x120] sm:$0xff]
    %v77 = vld [vmem:[#allocation5 + $0x128] sm:$0xff]
    %v78 = vld [vmem:[#allocation5 + $0x130] sm:$0xff]
    %v79 = vld [vmem:[#allocation5 + $0x138] sm:$0xff]
    %v80 = vld [vmem:[#allocation5 + $0x140] sm:$0xff]
    %v81 = vld [vmem:[#allocation5 + $0x148] sm:$0xff]
    %v82 = vld [vmem:[#allocation5 + $0x150] sm:$0xff]
    %v83 = vld [vmem:[#allocation5 + $0x158] sm:$0xff]
    %v84 = vld [vmem:[#allocation5 + $0x160] sm:$0xff]
    %v85 = vld [vmem:[#allocation5 + $0x168] sm:$0xff]
    %v86 = vld [vmem:[#allocation5 + $0x170] sm:$0xff]
    %v87 = vld [vmem:[#allocation5 + $0x178] sm:$0xff]
    %v88 = vld [vmem:[#allocation5 + $0x180] sm:$0xff]
    %v89 = vld [vmem:[#allocation5 + $0x188] sm:$0xff]
    %v90 = vld [vmem:[#allocation5 + $0x190] sm:$0xff]
    %v91 = vld [vmem:[#allocation5 + $0x198] sm:$0xff]
    %v92 = vld [vmem:[#allocation5 + $0x1a0] sm:$0xff]
    %v93 = vld [vmem:[#allocation5 + $0x1a8] sm:$0xff]
    %v94 = vld [vmem:[#allocation5 + $0x1b0] sm:$0xff]
    %v95 = vld [vmem:[#allocation5 + $0x1b8] sm:$0xff]
    %v96 = vld [vmem:[#allocation5 + $0x1c0] sm:$0xff]
    %v97 = vld [vmem:[#allocation5 + $0x1c8] sm:$0xff]
    %v98 = vld [vmem:[#allocation5 + $0x1d0] sm:$0xff]
    %v99 = vld [vmem:[#allocation5 + $0x1d8] sm:$0xff]
    %v100 = vld [vmem:[#allocation5 + $0x1e0] sm:$0xff]
    %v101 = vld [vmem:[#allocation5 + $0x1e8] sm:$0xff]
    %v102 = vld [vmem:[#allocation5 + $0x1f0] sm:$0xff]
    %v103 = vld [vmem:[#allocation5 + $0x1f8] sm:$0xff]
    %v104 = vld [vmem:[#allocation5 + $0x200] sm:$0xff]
    %v105 = vld [vmem:[#allocation5 + $0x208] sm:$0xff]
    %v106 = vld [vmem:[#allocation5 + $0x210] sm:$0xff]
    %v107 = vld [vmem:[#allocation5 + $0x218] sm:$0xff]
    %v108 = vld [vmem:[#allocation5 + $0x220] sm:$0xff]
    %v109 = vld [vmem:[#allocation5 + $0x228] sm:$0xff]
    %v110 = vld [vmem:[#allocation5 + $0x230] sm:$0xff]
    %v111 = vld [vmem:[#allocation5 + $0x238] sm:$0xff]
    %v112 = vld [vmem:[#allocation5 + $0x240] sm:$0xff]
    %v113 = vld [vmem:[#allocation5 + $0x248] sm:$0xff]
    %v114 = vld [vmem:[#allocation5 + $0x250] sm:$0xff]
    %v115 = vld [vmem:[#allocation5 + $0x258] sm:$0xff]
    %v116 = vld [vmem:[#allocation5 + $0x260] sm:$0xff]
    %v117 = vld [vmem:[#allocation5 + $0x268] sm:$0xff]
    %v118 = vld [vmem:[#allocation5 + $0x270] sm:$0xff]
    %v119 = vld [vmem:[#allocation5 + $0x278] sm:$0xff]
    %v120 = vld [vmem:[#allocation5 + $0x280] sm:$0xff]
    %v121 = vld [vmem:[#allocation5 + $0x288] sm:$0xff]
    %v122 = vld [vmem:[#allocation5 + $0x290] sm:$0xff]
    %v123 = vld [vmem:[#allocation5 + $0x298] sm:$0xff]
    %v124 = vld [vmem:[#allocation5 + $0x2a0] sm:$0xff]
    %v125 = vld [vmem:[#allocation5 + $0x2a8] sm:$0xff]
    %v126 = vld [vmem:[#allocation5 + $0x2b0] sm:$0xff]
    %v127 = vld [vmem:[#allocation5 + $0x2b8] sm:$0xff]
    %v128 = vld [vmem:[#allocation5 + $0x2c0] sm:$0xff]
    %v129 = vld [vmem:[#allocation5 + $0x2c8] sm:$0xff]
    %v130 = vld [vmem:[#allocation5 + $0x2d0] sm:$0xff]
    %v131 = vld [vmem:[#allocation5 + $0x2d8] sm:$0xff]
    %v132 = vld [vmem:[#allocation5 + $0x2e0] sm:$0xff]
    %v133 = vld [vmem:[#allocation5 + $0x2e8] sm:$0xff]
    %v134 = vld [vmem:[#allocation5 + $0x2f0] sm:$0xff]
    %v135 = vld [vmem:[#allocation5 + $0x2f8] sm:$0xff]
    %v136 = vld [vmem:[#allocation5 + $0x300] sm:$0xff]
    %v137 = vld [vmem:[#allocation5 + $0x308] sm:$0xff]
    %v138 = vld [vmem:[#allocation5 + $0x310] sm:$0xff]
    %v139 = vld [vmem:[#allocation5 + $0x318] sm:$0xff]
    %v140 = vld [vmem:[#allocation5 + $0x320] sm:$0xff]
    %v141 = vld [vmem:[#allocation5 + $0x328] sm:$0xff]
    %v142 = vld [vmem:[#allocation5 + $0x330] sm:$0xff]
    %v143 = vld [vmem:[#allocation5 + $0x338] sm:$0xff]
    %v144 = vld [vmem:[#allocation5 + $0x340] sm:$0xff]
    %v145 = vld [vmem:[#allocation5 + $0x348] sm:$0xff]
    %v146 = vld [vmem:[#allocation5 + $0x350] sm:$0xff]
    %v147 = vld [vmem:[#allocation5 + $0x358] sm:$0xff]
    %v148 = vld [vmem:[#allocation5 + $0x360] sm:$0xff]
    %v149 = vld [vmem:[#allocation5 + $0x368] sm:$0xff]
    %v150 = vld [vmem:[#allocation5 + $0x370] sm:$0xff]
    %v151 = vld [vmem:[#allocation5 + $0x378] sm:$0xff]
    %v152 = vld [vmem:[#allocation5 + $0x380] sm:$0xff]
    %v153 = vld [vmem:[#allocation5 + $0x388] sm:$0xff]
    %v154 = vld [vmem:[#allocation5 + $0x390] sm:$0xff]
    %v155 = vld [vmem:[#allocation5 + $0x398] sm:$0xff]
    %v156 = vld [vmem:[#allocation5 + $0x3a0] sm:$0xff]
    %v157 = vld [vmem:[#allocation5 + $0x3a8] sm:$0xff]
    %v158 = vld [vmem:[#allocation5 + $0x3b0] sm:$0xff]
    %v159 = vld [vmem:[#allocation5 + $0x3b8] sm:$0xff]
    %v160 = vld [vmem:[#allocation5 + $0x3c0] sm:$0xff]
    %v161 = vld [vmem:[#allocation5 + $0x3c8] sm:$0xff]
    %v162 = vld [vmem:[#allocation5 + $0x3d0] sm:$0xff]
    %v163 = vld [vmem:[#allocation5 + $0x3d8] sm:$0xff]
    %v164 = vld [vmem:[#allocation5 + $0x3e0] sm:$0xff]
    %v165 = vld [vmem:[#allocation5 + $0x3e8] sm:$0xff]
    %v166 = vld [vmem:[#allocation5 + $0x3f0] sm:$0xff]
    %v167 = vld [vmem:[#allocation5 + $0x3f8] sm:$0xff]
    %v168 = vld [vmem:[#allocation5 + $0x400] sm:$0xff]
    %v169 = vld [vmem:[#allocation5 + $0x408] sm:$0xff]
    %v170 = vld [vmem:[#allocation5 + $0x410] sm:$0xff]
    %v171 = vld [vmem:[#allocation5 + $0x418] sm:$0xff]
    %v172 = vld [vmem:[#allocation5 + $0x420] sm:$0xff]
    %v173 = vld [vmem:[#allocation5 + $0x428] sm:$0xff]
    %v174 = vld [vmem:[#allocation5 + $0x430] sm:$0xff]
    %v175 = vld [vmem:[#allocation5 + $0x438] sm:$0xff]
    %v176 = vld [vmem:[#allocation5 + $0x440] sm:$0xff]
    %v177 = vld [vmem:[#allocation5 + $0x448] sm:$0xff]
    %v178 = vld [vmem:[#allocation5 + $0x450] sm:$0xff]
    %v179 = vld [vmem:[#allocation5 + $0x458] sm:$0xff]
    %v180 = vld [vmem:[#allocation5 + $0x460] sm:$0xff]
    %v181 = vld [vmem:[#allocation5 + $0x468] sm:$0xff]
    %v182 = vld [vmem:[#allocation5 + $0x470] sm:$0xff]
    %v183 = vld [vmem:[#allocation5 + $0x478] sm:$0xff]
    %v184 = vld [vmem:[#allocation5 + $0x480] sm:$0xff]
    %v185 = vld [vmem:[#allocation5 + $0x488] sm:$0xff]
    %v186 = vld [vmem:[#allocation5 + $0x490] sm:$0xff]
    %v187 = vld [vmem:[#allocation5 + $0x498] sm:$0xff]
    %v188 = vld [vmem:[#allocation5 + $0x4a0] sm:$0xff]
    %v189 = vld [vmem:[#allocation5 + $0x4a8] sm:$0xff]
    %v190 = vld [vmem:[#allocation5 + $0x4b0] sm:$0xff]
    %v191 = vld [vmem:[#allocation5 + $0x4b8] sm:$0xff]
    %v192 = vld [vmem:[#allocation5 + $0x4c0] sm:$0xff]
    %v193 = vld [vmem:[#allocation5 + $0x4c8] sm:$0xff]
    %v194 = vld [vmem:[#allocation5 + $0x4d0] sm:$0xff]
    %v195 = vld [vmem:[#allocation5 + $0x4d8] sm:$0xff]
    %v196 = vld [vmem:[#allocation5 + $0x4e0] sm:$0xff]
    %v197 = vld [vmem:[#allocation5 + $0x4e8] sm:$0xff]
    %v198 = vld [vmem:[#allocation5 + $0x4f0] sm:$0xff]
    %v199 = vld [vmem:[#allocation5 + $0x4f8] sm:$0xff]
    %v200 = vld [vmem:[#allocation5 + $0x500] sm:$0xff]
    %v201 = vld [vmem:[#allocation5 + $0x508] sm:$0xff]
    %v202 = vld [vmem:[#allocation5 + $0x510] sm:$0xff]
    %v203 = vld [vmem:[#allocation5 + $0x518] sm:$0xff]
    %v204 = vld [vmem:[#allocation5 + $0x520] sm:$0xff]
    %v205 = vld [vmem:[#allocation5 + $0x528] sm:$0xff]
    %v206 = vld [vmem:[#allocation5 + $0x530] sm:$0xff]
    %v207 = vld [vmem:[#allocation5 + $0x538] sm:$0xff]
    %v208 = vld [vmem:[#allocation5 + $0x540] sm:$0xff]
    %v209 = vld [vmem:[#allocation5 + $0x548] sm:$0xff]
    %v210 = vld [vmem:[#allocation5 + $0x550] sm:$0xff]
    %v211 = vld [vmem:[#allocation5 + $0x558] sm:$0xff]
    %v212 = vld [vmem:[#allocation5 + $0x560] sm:$0xff]
    %v213 = vld [vmem:[#allocation5 + $0x568] sm:$0xff]
    %v214 = vld [vmem:[#allocation5 + $0x570] sm:$0xff]
    %v215 = vld [vmem:[#allocation5 + $0x578] sm:$0xff]
    %v216 = vld [vmem:[#allocation5 + $0x580] sm:$0xff]
    %v217 = vld [vmem:[#allocation5 + $0x588] sm:$0xff]
    %v218 = vld [vmem:[#allocation5 + $0x590] sm:$0xff]
    %v219 = vld [vmem:[#allocation5 + $0x598] sm:$0xff]
    %v220 = vld [vmem:[#allocation5 + $0x5a0] sm:$0xff]
    %v221 = vld [vmem:[#allocation5 + $0x5a8] sm:$0xff]
    %v222 = vld [vmem:[#allocation5 + $0x5b0] sm:$0xff]
    %v223 = vld [vmem:[#allocation5 + $0x5b8] sm:$0xff]
    %v224 = vld [vmem:[#allocation5 + $0x5c0] sm:$0xff]
    %v225 = vld [vmem:[#allocation5 + $0x5c8] sm:$0xff]
    %v226 = vld [vmem:[#allocation5 + $0x5d0] sm:$0xff]
    %v227 = vld [vmem:[#allocation5 + $0x5d8] sm:$0xff]
    %v228 = vld [vmem:[#allocation5 + $0x5e0] sm:$0xff]
    %v229 = vld [vmem:[#allocation5 + $0x5e8] sm:$0xff]
    %v230 = vld [vmem:[#allocation5 + $0x5f0] sm:$0xff]
    %v231 = vld [vmem:[#allocation5 + $0x5f8] sm:$0xff]
    %232 = vmatprep.subr.mxu0 %v131
    %233 = vmatpush1.msra.mxu0 %v130
    %234 = vmatprep.subr.mxu0 %v125
    %235 = vmatpush1.msra.mxu0 %v124
    %236 = vmatprep.subr.mxu0 %v119
    %237 = vmatpush1.msra.mxu0 %v118
    %238 = vmatprep.subr.mxu0 %v113
    %239 = vmatpush1.msra.mxu0 %v112
    %240 = vmatprep.subr.mxu0 %v107
    %241 = vmatpush1.msra.mxu0 %v106
    %242 = vmatprep.subr.mxu0 %v101
    %243 = vmatpush1.msra.mxu0 %v100
    %244 = vmatprep.subr.mxu0 %v95
    %245 = vmatpush1.msra.mxu0 %v94
    %246 = vmatprep.subr.mxu0 %v89
    %247 = vmatpush1.msra.mxu0 %v88
    %248 = vmatprep.subr.mxu0 %v83
    %249 = vmatpush1.msra.mxu0 %v82
    %250 = vmatprep.subr.mxu0 %v77
    %251 = vmatpush1.msra.mxu0 %v76
    %252 = vmatprep.subr.mxu0 %v71
    %253 = vmatpush1.msra.mxu0 %v70
    %254 = vmatprep.subr.mxu0 %v65
    %255 = vmatpush1.msra.mxu0 %v64
    %256 = vmatprep.subr.mxu0 %v59
    %257 = vmatpush1.msra.mxu0 %v58
    %258 = vmatprep.subr.mxu0 %v53
    %259 = vmatpush1.msra.mxu0 %v52
    %260 = vmatprep.subr.mxu0 %v47
    %261 = vmatpush1.msra.mxu0 %v46
    %262 = vmatprep.subr.mxu0 %v41
    %263 = vmatpush1.msra.mxu0 %v40
    %264 = vmatprep.subr.mxu0 %v227
    %265 = vmatpush2.msra.mxu0 %v226
    %266 = vmatprep.subr.mxu0 %v221
    %267 = vmatpush2.msra.mxu0 %v220
    %268 = vmatprep.subr.mxu0 %v215
    %269 = vmatpush2.msra.mxu0 %v214
    %270 = vmatprep.subr.mxu0 %v209
    %271 = vmatpush2.msra.mxu0 %v208
    %272 = vmatprep.subr.mxu0 %v203
    %273 = vmatpush2.msra.mxu0 %v202
    %274 = vmatprep.subr.mxu0 %v197
    %275 = vmatpush2.msra.mxu0 %v196
    %276 = vmatprep.subr.mxu0 %v191
    %277 = vmatpush2.msra.mxu0 %v190
    %278 = vmatprep.subr.mxu0 %v185
    %279 = vmatpush2.msra.mxu0 %v184
    %280 = vmatprep.subr.mxu0 %v179
    %281 = vmatpush2.msra.mxu0 %v178
    %282 = vmatprep.subr.mxu0 %v173
    %283 = vmatpush2.msra.mxu0 %v172
    %284 = vmatprep.subr.mxu0 %v167
    %285 = vmatpush2.msra.mxu0 %v166
    %286 = vmatprep.subr.mxu0 %v161
    %287 = vmatpush2.msra.mxu0 %v160
    %288 = vmatprep.subr.mxu0 %v155
    %289 = vmatpush2.msra.mxu0 %v154
    %290 = vmatprep.subr.mxu0 %v149
    %291 = vmatpush2.msra.mxu0 %v148
    %292 = vmatprep.subr.mxu0 %v143
    %293 = vmatpush2.msra.mxu0 %v142
    %294 = vmatprep.subr.mxu0 %v137
    %295 = vmatpush2.msra.mxu0 %v136
    %296 = vmatprep.mubr.f32.mxu0 %v39
    %297 = vmatmul.mubr.f32.gmra.mxu0 %v38
    %v298 = vpop.f32.mrf.mxu0
    %v299 = vadd.f32 0.0, %v298
    %v300 = vpop.f32.mrf.mxu0
    %v301 = vadd.f32 0.0, %v300
    %302 = vdwg.mxu0
    %303 = vmatprep.subr.mxu0 %v133
    %304 = vmatpush1.msra.mxu0 %v132
    %305 = vmatprep.subr.mxu0 %v127
    %306 = vmatpush1.msra.mxu0 %v126
    %307 = vmatprep.subr.mxu0 %v121
    %308 = vmatpush1.msra.mxu0 %v120
    %309 = vmatprep.subr.mxu0 %v115
    %310 = vmatpush1.msra.mxu0 %v114
    %311 = vmatprep.subr.mxu0 %v109
    %312 = vmatpush1.msra.mxu0 %v108
    %313 = vmatprep.subr.mxu0 %v103
    %314 = vmatpush1.msra.mxu0 %v102
    %315 = vmatprep.subr.mxu0 %v97
    %316 = vmatpush1.msra.mxu0 %v96
    %317 = vmatprep.subr.mxu0 %v91
    %318 = vmatpush1.msra.mxu0 %v90
    %319 = vmatprep.subr.mxu0 %v85
    %320 = vmatpush1.msra.mxu0 %v84
    %321 = vmatprep.subr.mxu0 %v79
    %322 = vmatpush1.msra.mxu0 %v78
    %323 = vmatprep.subr.mxu0 %v73
    %324 = vmatpush1.msra.mxu0 %v72
    %325 = vmatprep.subr.mxu0 %v67
    %326 = vmatpush1.msra.mxu0 %v66
    %327 = vmatprep.subr.mxu0 %v61
    %328 = vmatpush1.msra.mxu0 %v60
    %329 = vmatprep.subr.mxu0 %v55
    %330 = vmatpush1.msra.mxu0 %v54
    %331 = vmatprep.subr.mxu0 %v49
    %332 = vmatpush1.msra.mxu0 %v48
    %333 = vmatprep.subr.mxu0 %v43
    %334 = vmatpush1.msra.mxu0 %v42
    %335 = vmatprep.subr.mxu0 %v229
    %336 = vmatpush2.msra.mxu0 %v228
    %337 = vmatprep.subr.mxu0 %v223
    %338 = vmatpush2.msra.mxu0 %v222
    %339 = vmatprep.subr.mxu0 %v217
    %340 = vmatpush2.msra.mxu0 %v216
    %341 = vmatprep.subr.mxu0 %v211
    %342 = vmatpush2.msra.mxu0 %v210
    %343 = vmatprep.subr.mxu0 %v205
    %344 = vmatpush2.msra.mxu0 %v204
    %345 = vmatprep.subr.mxu0 %v199
    %346 = vmatpush2.msra.mxu0 %v198
    %347 = vmatprep.subr.mxu0 %v193
    %348 = vmatpush2.msra.mxu0 %v192
    %349 = vmatprep.subr.mxu0 %v187
    %350 = vmatpush2.msra.mxu0 %v186
    %351 = vmatprep.subr.mxu0 %v181
    %352 = vmatpush2.msra.mxu0 %v180
    %353 = vmatprep.subr.mxu0 %v175
    %354 = vmatpush2.msra.mxu0 %v174
    %355 = vmatprep.subr.mxu0 %v169
    %356 = vmatpush2.msra.mxu0 %v168
    %357 = vmatprep.subr.mxu0 %v163
    %358 = vmatpush2.msra.mxu0 %v162
    %359 = vmatprep.subr.mxu0 %v157
    %360 = vmatpush2.msra.mxu0 %v156
    %361 = vmatprep.subr.mxu0 %v151
    %362 = vmatpush2.msra.mxu0 %v150
    %363 = vmatprep.subr.mxu0 %v145
    %364 = vmatpush2.msra.mxu0 %v144
    %365 = vmatprep.subr.mxu0 %v139
    %366 = vmatpush2.msra.mxu0 %v138
    %367 = vmatprep.mubr.f32.mxu0 %v39
    %368 = vmatmul.mubr.f32.gmra.mxu0 %v38
    %v369 = vpop.f32.mrf.mxu0
    %v370 = vadd.f32 0.0, %v369
    %v371 = vpop.f32.mrf.mxu0
    %v372 = vadd.f32 0.0, %v371
    %373 = vdwg.mxu0
    %374 = vmatprep.subr.mxu0 %v135
    %375 = vmatpush1.msra.mxu0 %v134
    %376 = vmatprep.subr.mxu0 %v129
    %377 = vmatpush1.msra.mxu0 %v128
    %378 = vmatprep.subr.mxu0 %v123
    %379 = vmatpush1.msra.mxu0 %v122
    %380 = vmatprep.subr.mxu0 %v117
    %381 = vmatpush1.msra.mxu0 %v116
    %382 = vmatprep.subr.mxu0 %v111
    %383 = vmatpush1.msra.mxu0 %v110
    %384 = vmatprep.subr.mxu0 %v105
    %385 = vmatpush1.msra.mxu0 %v104
    %386 = vmatprep.subr.mxu0 %v99
    %387 = vmatpush1.msra.mxu0 %v98
    %388 = vmatprep.subr.mxu0 %v93
    %389 = vmatpush1.msra.mxu0 %v92
    %390 = vmatprep.subr.mxu0 %v87
    %391 = vmatpush1.msra.mxu0 %v86
    %392 = vmatprep.subr.mxu0 %v81
    %393 = vmatpush1.msra.mxu0 %v80
    %394 = vmatprep.subr.mxu0 %v75
    %395 = vmatpush1.msra.mxu0 %v74
    %396 = vmatprep.subr.mxu0 %v69
    %397 = vmatpush1.msra.mxu0 %v68
    %398 = vmatprep.subr.mxu0 %v63
    %399 = vmatpush1.msra.mxu0 %v62
    %400 = vmatprep.subr.mxu0 %v57
    %401 = vmatpush1.msra.mxu0 %v56
    %402 = vmatprep.subr.mxu0 %v51
    %403 = vmatpush1.msra.mxu0 %v50
    %404 = vmatprep.subr.mxu0 %v45
    %405 = vmatpush1.msra.mxu0 %v44
    %406 = vmatprep.subr.mxu0 %v231
    %407 = vmatpush2.msra.mxu0 %v230
    %408 = vmatprep.subr.mxu0 %v225
    %409 = vmatpush2.msra.mxu0 %v224
    %410 = vmatprep.subr.mxu0 %v219
    %411 = vmatpush2.msra.mxu0 %v218
    %412 = vmatprep.subr.mxu0 %v213
    %413 = vmatpush2.msra.mxu0 %v212
    %414 = vmatprep.subr.mxu0 %v207
    %415 = vmatpush2.msra.mxu0 %v206
    %416 = vmatprep.subr.mxu0 %v201
    %417 = vmatpush2.msra.mxu0 %v200
    %418 = vmatprep.subr.mxu0 %v195
    %419 = vmatpush2.msra.mxu0 %v194
    %420 = vmatprep.subr.mxu0 %v189
    %421 = vmatpush2.msra.mxu0 %v188
    %422 = vmatprep.subr.mxu0 %v183
    %423 = vmatpush2.msra.mxu0 %v182
    %424 = vmatprep.subr.mxu0 %v177
    %425 = vmatpush2.msra.mxu0 %v176
    %426 = vmatprep.subr.mxu0 %v171
    %427 = vmatpush2.msra.mxu0 %v170
    %428 = vmatprep.subr.mxu0 %v165
    %429 = vmatpush2.msra.mxu0 %v164
    %430 = vmatprep.subr.mxu0 %v159
    %431 = vmatpush2.msra.mxu0 %v158
    %432 = vmatprep.subr.mxu0 %v153
    %433 = vmatpush2.msra.mxu0 %v152
    %434 = vmatprep.subr.mxu0 %v147
    %435 = vmatpush2.msra.mxu0 %v146
    %436 = vmatprep.subr.mxu0 %v141
    %437 = vmatpush2.msra.mxu0 %v140
    %438 = vmatprep.mubr.f32.mxu0 %v39
    %439 = vmatmul.mubr.f32.gmra.mxu0 %v38
    %v440 = vpop.f32.mrf.mxu0
    %v441 = vadd.f32 0.0, %v440
    %v442 = vpop.f32.mrf.mxu0
    %v443 = vadd.f32 0.0, %v442
    %444 = vdwg.mxu0
    %445 = vst [vmem:[#allocation7] sm:$0xff] %v299
    %446 = vst [vmem:[#allocation7 + $0x8] sm:$0xff] %v301
    %447 = vst [vmem:[#allocation7 + $0x10] sm:$0xff] %v370
    %448 = vst [vmem:[#allocation7 + $0x18] sm:$0xff] %v372
    %449 = vst [vmem:[#allocation7 + $0x20] sm:$0xff] %v441
    %450 = vst [vmem:[#allocation7 + $0x28] sm:$0xff] %v443
    // Predicated region
    $region18: #{tpu_custom_call.1} parent=1 // pred_check
      _
    $region19: #{tpu_custom_call.1} parent=1 // pred_check_branch
      %452 = sbr.rel (0) target = $region21
    $region20: #{tpu_custom_call.1} parent=1 // pred_region
      %s454 = ssub.s32 768, 768
      %455 = vsyncadd [#allocation4], %s454
      %s457 = sshll.u32 [#allocation7], 4
      %s458 = int_to_ptr.vmem [resolvable:$true] %s457
      %460 = dma.vmem_to_hbm [thread:$0]  %s458, 768, %s2, [#allocation4]
    $region21: #{tpu_custom_call.1} parent=1 // pred_fallthru
      _
    // Predicated region
    $region22: #{tpu_custom_call.1} parent=1 // pred_check
      _
    $region23: #{tpu_custom_call.1} parent=1 // pred_check_branch
      %462 = sbr.rel (0) target = $region25
    $region24: #{tpu_custom_call.1} parent=1 // pred_region
      %463 = dma.done [#allocation4], 768
    $region25: #{tpu_custom_call.1} parent=1 // pred_fallthru
      _
    %464 = vsyncpa [#allocation3], 1
    %465 = vsyncpa [#allocation6], 1
    %466 = vsyncpa [#allocation4], 1

</llo_original>
